<compile_context>
chip_gen: v7x
topology: tpu7x:2x2x1
jax: 0.10.0
libtpu: 0.0.40
codegen_flags: <defaults>
</compile_context>

<pallas_src>
import jax
import jax.numpy as jnp
from jax.experimental import pallas as pl
from jax.experimental.pallas import tpu as pltpu


def _round_up(v, m):
    return (v + m - 1) // m * m


def _encoder_pool_kernel(n_pad_cols, inv_hw):
    """Fused: 1x1-conv encoder stand-in + bias + ReLU + global average pool."""

    def kernel(x_ref, wT_ref, b_ref, pooled_ref, acc_ref):
        hw_id = pl.program_id(1)

        @pl.when(hw_id == 0)
        def _init():
            acc_ref[...] = jnp.zeros_like(acc_ref)

        # encoder.forward_features stand-in: pointwise channel matmul + bias + ReLU,
        # computed transposed so HW stays on the lane axis (no C padding needed).
        featT = jnp.dot(wT_ref[...], x_ref[0],
                        preferred_element_type=jnp.float32)        # (F, tile_hw)
        featT = jnp.maximum(featT + b_ref[...], 0.0)

        # global_pool folded into the HW reduction: lane reduce (XLU slot has slack).
        acc_ref[...] += jnp.sum(featT, axis=1, keepdims=True)      # (F, 1)

        @pl.when(hw_id == pl.num_programs(1) - 1)
        def _finalize():
            pooled = acc_ref[...]
            if n_pad_cols:
                # Zero-padded HW columns each contributed relu(b_enc); remove their
                # contribution once here instead of masking every hot-loop step.
                pooled = pooled - float(n_pad_cols) * jnp.maximum(b_ref[...], 0.0)
            pooled_ref[0] = pooled * inv_hw

    return kernel


def basenet_forward(x_nchw, w_enc, b_enc, w_fc, b_fc, *, tile_hw=None):
    """BaseNet.forward (eval mode: dropout is identity).

    x_nchw: (N, C_in, H, W) f32
    w_enc:  (C_in, F)   encoder pointwise-conv weight (forward_features stand-in)
    b_enc:  (1, F)
    w_fc:   (F, num_classes)   nn.Linear weight, pre-transposed
    b_fc:   (1, num_classes)
    returns (N, num_classes) f32
    """
    N, C, H, W = x_nchw.shape
    HW = H * W
    F = w_enc.shape[1]

    # Per-generation VMEM budget (cap ~48 MiB on v7x's 64 MiB, more on v5e/v6e).
    try:
        vmem_cap = int(pltpu.get_tpu_info().vmem_capacity_bytes)
    except Exception:  # conservative fallback if the query is unavailable
        vmem_cap = 64 * 1024 * 1024
    vmem_limit = int(min(max(vmem_cap * 3 // 4, 32 * 1024 * 1024), 96 * 1024 * 1024))

    # Tile the HW (lane) axis: large tiles amortize the ~0.35us per-grid-step
    # overhead; capped so the (F, tile_hw) f32 feature tile keeps VMEM headroom.
    if tile_hw is None:
        tile_hw = 4096 if vmem_cap > 64 * 1024 * 1024 else 2048
    max_by_vmem = max(128, ((vmem_limit // 4) // (max(F, 1) * 4)) // 128 * 128)
    tile_hw = max(128, min(_round_up(tile_hw, 128), _round_up(HW, 128), max_by_vmem))
    HW_pad = _round_up(HW, tile_hw)
    hw_blocks = HW_pad // tile_hw
    n_pad_cols = HW_pad - HW

    # x stays in native NCHW layout: (N, C, HW) view; pad the lane axis only if needed
    # (no transpose, no channel padding, no dtype-cast pre-pass over x in HBM).
    x = x_nchw.reshape(N, C, HW)
    if n_pad_cols:
        x = jnp.pad(x, ((0, 0), (0, 0), (0, n_pad_cols)))

    wT = jnp.transpose(w_enc).astype(jnp.float32)            # (F, C)  - tiny
    b_col = jnp.reshape(b_enc, (F, 1)).astype(jnp.float32)   # (F, 1)  - tiny

    cost = pl.CostEstimate(
        flops=2 * N * HW_pad * C * F,
        transcendentals=0,
        bytes_accessed=x.size * 4 + wT.size * 4 + b_col.size * 4 + N * F * 4,
    )

    pooled = pl.pallas_call(
        _encoder_pool_kernel(n_pad_cols, 1.0 / float(HW)),
        out_shape=jax.ShapeDtypeStruct((N, F, 1), jnp.float32),
        grid_spec=pltpu.PrefetchScalarGridSpec(
            num_scalar_prefetch=0,
            grid=(N, hw_blocks),
            in_specs=[
                # x: one (C, tile_hw) spatial slab of sample n per grid step.
                pl.BlockSpec((1, C, tile_hw), lambda n, hw: (n, 0, hw)),
                # tiny grid-invariant VMEM residents.
                pl.BlockSpec((F, C), lambda n, hw: (0, 0)),
                pl.BlockSpec((F, 1), lambda n, hw: (0, 0)),
            ],
            # Output block index is constant across the hw reduction axis, so the
            # pooled accumulator lives across it ('arbitrary' + innermost: required).
            out_specs=pl.BlockSpec((1, F, 1), lambda n, hw: (n, 0, 0)),
            scratch_shapes=[pltpu.VMEM((F, 1), jnp.float32)],
        ),
        compiler_params=pltpu.CompilerParams(
            dimension_semantics=("parallel", "arbitrary"),
            vmem_limit_bytes=vmem_limit,
        ),
        cost_estimate=cost,
    )(x, wT, b_col)

    pooled = pooled[:, :, 0]             # (N, F)  == global_pool(...).flatten(1)
    # dropout: identity in eval mode.
    # fc hoisted out of the kernel: one batched (N, F) @ (F, NC) XLA matmul.
    return jnp.dot(pooled, w_fc, precision=jax.lax.Precision.HIGHEST) + b_fc


if __name__ == "__main__":
    # Small, deterministic shapes consistent with the module's forward.
    N, C_in, H, W = 2, 4, 16, 16
    num_features = 32     # self.num_features (encoder output channels)
    num_classes = 2

    key = jax.random.PRNGKey(0)
    kx, k1, k2, k3, k4 = jax.random.split(key, 5)

    x = jax.random.normal(kx, (N, C_in, H, W), dtype=jnp.float32)
    w_enc = jax.random.normal(k1, (C_in, num_features), dtype=jnp.float32) * 0.1
    b_enc = jax.random.normal(k2, (1, num_features), dtype=jnp.float32) * 0.1
    w_fc = jax.random.normal(k3, (num_features, num_classes), dtype=jnp.float32) * 0.1
    b_fc = jax.random.normal(k4, (1, num_classes), dtype=jnp.float32) * 0.1

    out = basenet_forward(x, w_enc, b_enc, w_fc, b_fc)
    out = jax.block_until_ready(out)

    # Pure-JAX f32 reference of the same forward semantics.
    xr = jnp.transpose(x, (0, 2, 3, 1)).reshape(N, H * W, C_in)
    feat_ref = jnp.maximum(
        jnp.einsum("nhc,cf->nhf", xr, w_enc,
                   precision=jax.lax.Precision.HIGHEST) + b_enc, 0.0)
    pooled_ref = jnp.mean(feat_ref, axis=1)
    ref = jnp.dot(pooled_ref, w_fc, precision=jax.lax.Precision.HIGHEST) + b_fc

    assert out.shape == (N, num_classes)
    assert jnp.allclose(out, ref, atol=2e-3, rtol=2e-3), "mismatch vs reference"
    print("KERNEL_OK")
</pallas_src>

<mosaic_0001>
module attributes {stable_mosaic.version = 11 : i64} {
  func.func @kernel(%arg0: i32, %arg1: i32, %arg2: memref<1x4x256xf32, #tpu.memory_space<vmem>>, %arg3: memref<32x4xf32, #tpu.memory_space<vmem>>, %arg4: memref<32x1xf32, #tpu.memory_space<vmem>>, %arg5: memref<1x32x1xf32, #tpu.memory_space<vmem>>, %arg6: memref<32x1xf32, #tpu.memory_space<vmem>>) attributes {dimension_semantics = [#tpu.dimension_semantics<parallel>, #tpu.dimension_semantics<arbitrary>], iteration_bounds = array<i64: 2, 1>, scalar_prefetch = 0 : i64, scratch_operands = 1 : i64, tpu.core_type = #tpu.core_type<tc>, window_params = [{transform_indices = @transform_0, window_bounds = array<i64: 1, 4, 256>}, {pipeline_mode = #tpu.pipeline_mode<synchronous>, transform_indices = @transform_1, window_bounds = array<i64: 32, 4>}, {pipeline_mode = #tpu.pipeline_mode<synchronous>, transform_indices = @transform_2, window_bounds = array<i64: 32, 1>}, {transform_indices = @transform_3, window_bounds = array<i64: 1, 32, 1>}]} {
    %c0_i32 = arith.constant 0 : i32
    %0 = arith.cmpi eq, %arg1, %c0_i32 : i32
    %1 = arith.extui %0 : i1 to i32
    %c0_i32_0 = arith.constant 0 : i32
    %2 = arith.cmpi ne, %1, %c0_i32_0 : i32
    scf.if %2 {
      %cst_15 = arith.constant 0.000000e+00 : f32
      %20 = vector.broadcast %cst_15 : f32 to vector<32x1xf32>
      %c0_16 = arith.constant 0 : index
      %c0_17 = arith.constant 0 : index
      %21 = vector.load %arg6[%c0_16, %c0_17] : memref<32x1xf32, #tpu.memory_space<vmem>>, vector<32x1xf32>
      tpu.vector_store %arg6[%c0_16, %c0_17], %20 {strides = array<i32>} : memref<32x1xf32, #tpu.memory_space<vmem>>, vector<32x1xf32>,
    } else {
    }
    %c0 = arith.constant 0 : index
    %c0_1 = arith.constant 0 : index
    %3 = vector.load %arg3[%c0, %c0_1] : memref<32x4xf32, #tpu.memory_space<vmem>>, vector<32x4xf32>
    %c0_2 = arith.constant 0 : index
    %c0_3 = arith.constant 0 : index
    %c0_4 = arith.constant 0 : index
    %4 = vector.load %arg2[%c0_2, %c0_3, %c0_4] : memref<1x4x256xf32, #tpu.memory_space<vmem>>, vector<1x4x256xf32>
    %5 = vector.shape_cast %4 : vector<1x4x256xf32> to vector<4x256xf32>
    %cst = arith.constant dense<0.000000e+00> : vector<32x256xf32>
    %6 = tpu.matmul %3, %5, %cst {dimension_numbers = #tpu.dot_dimension_numbers<[1], [0], [0], [1], [0, 0, 1, 1], [], []>} : vector<32x4xf32>, vector<4x256xf32>, vector<32x256xf32> -> vector<32x256xf32>
    %c0_5 = arith.constant 0 : index
    %c0_6 = arith.constant 0 : index
    %7 = vector.load %arg4[%c0_5, %c0_6] : memref<32x1xf32, #tpu.memory_space<vmem>>, vector<32x1xf32>
    %8 = vector.broadcast %7 : vector<32x1xf32> to vector<32x256xf32>
    %9 = arith.addf %6, %8 : vector<32x256xf32>
    %cst_7 = arith.constant 0.000000e+00 : f32
    %10 = vector.broadcast %cst_7 : f32 to vector<32x256xf32>
    %11 = arith.maximumf %9, %10 : vector<32x256xf32>
    %c0_8 = arith.constant 0 : index
    %c0_9 = arith.constant 0 : index
    %12 = vector.load %arg6[%c0_8, %c0_9] : memref<32x1xf32, #tpu.memory_space<vmem>>, vector<32x1xf32>
    %cst_10 = arith.constant dense<0.000000e+00> : vector<32xf32>
    %13 = vector.multi_reduction <add>, %11, %cst_10 [1] : vector<32x256xf32> to vector<32xf32>
    %14 = vector.shape_cast %13 : vector<32xf32> to vector<32x1xf32>
    %15 = arith.addf %12, %14 : vector<32x1xf32>
    %c0_11 = arith.constant 0 : index
    %c0_12 = arith.constant 0 : index
    %16 = vector.load %arg6[%c0_11, %c0_12] : memref<32x1xf32, #tpu.memory_space<vmem>>, vector<32x1xf32>
    tpu.vector_store %arg6[%c0_11, %c0_12], %15 {strides = array<i32>} : memref<32x1xf32, #tpu.memory_space<vmem>>, vector<32x1xf32>,
    %c0_i32_13 = arith.constant 0 : i32
    %17 = arith.cmpi eq, %arg1, %c0_i32_13 : i32
    %18 = arith.extui %17 : i1 to i32
    %c0_i32_14 = arith.constant 0 : i32
    %19 = arith.cmpi ne, %18, %c0_i32_14 : i32
    scf.if %19 {
      %c0_15 = arith.constant 0 : index
      %c0_16 = arith.constant 0 : index
      %20 = vector.load %arg6[%c0_15, %c0_16] : memref<32x1xf32, #tpu.memory_space<vmem>>, vector<32x1xf32>
      %cst_17 = arith.constant 3.906250e-03 : f32
      %21 = vector.broadcast %cst_17 : f32 to vector<32x1xf32>
      %22 = arith.mulf %20, %21 : vector<32x1xf32>
      %c0_18 = arith.constant 0 : index
      %c0_19 = arith.constant 0 : index
      %c0_20 = arith.constant 0 : index
      %23 = vector.load %arg5[%c0_18, %c0_19, %c0_20] : memref<1x32x1xf32, #tpu.memory_space<vmem>>, vector<1x32x1xf32>
      %24 = vector.shape_cast %23 : vector<1x32x1xf32> to vector<32x1xf32>
      %25 = vector.shape_cast %22 : vector<32x1xf32> to vector<1x32x1xf32>
      tpu.vector_store %arg5[%c0_18, %c0_19, %c0_20], %25 {strides = array<i32>} : memref<1x32x1xf32, #tpu.memory_space<vmem>>, vector<1x32x1xf32>,
    } else {
    }
    return
  }
  func.func @transform_0(%arg0: i32, %arg1: i32) -> (i32, i32, i32) {
    %c0_i32 = arith.constant 0 : i32
    %c0_i32_0 = arith.constant 0 : i32
    return %arg0, %c0_i32, %arg1 : i32, i32, i32
  }
  func.func @transform_1(%arg0: i32, %arg1: i32) -> (i32, i32) {
    %c0_i32 = arith.constant 0 : i32
    %c0_i32_0 = arith.constant 0 : i32
    %c0_i32_1 = arith.constant 0 : i32
    return %c0_i32, %c0_i32_0 : i32, i32
  }
  func.func @transform_2(%arg0: i32, %arg1: i32) -> (i32, i32) {
    %c0_i32 = arith.constant 0 : i32
    %c0_i32_0 = arith.constant 0 : i32
    %c0_i32_1 = arith.constant 0 : i32
    return %c0_i32, %c0_i32_0 : i32, i32
  }
  func.func @transform_3(%arg0: i32, %arg1: i32) -> (i32, i32, i32) {
    %c0_i32 = arith.constant 0 : i32
    %c0_i32_0 = arith.constant 0 : i32
    %c0_i32_1 = arith.constant 0 : i32
    return %arg0, %c0_i32, %c0_i32_0 : i32, i32, i32
  }
}

</mosaic_0001>

<llo_original>
// kernel: tpu_custom_call.1
$region0: #{tpu_custom_call.1}
  #allocation0 [shape = 'u32[]', space=smem, size = 0x4, offset = 0x4, fixed_abs, tag = 'smem constant byte address 0x4 - core index']
  #allocation1 [shape = 'u32[144,128]{1,0:T(1,128)}', space=vmem, size = 0x12000, scoped, tag = 'internal scratch']
  #allocation2 [shape = 'f32[32,1]{1,0:T(8,128)}', space=vmem, size = 0x4000, scoped, tag = 'scratch operand']
  %s0 = inlined_call_operand.vmem [shape: f32[2,4,256], index: 0, kind: input, shape index: {}]
  %s1 = inlined_call_operand.vmem [shape: f32[32,4], index: 1, kind: input, shape index: {}]
  %s2 = inlined_call_operand.vmem [shape: f32[32,1], index: 2, kind: input, shape index: {}]
  %s3 = inlined_call_operand.vmem [shape: f32[2,32,1], index: 3, kind: output, shape index: {}]
  %s4 = sld [smem:[#allocation0]]
  $region53: #{tpu_custom_call.1} parent=0
    _
  %s6 = ssub.s32 1, %s4
  %s7 = scalar_select 0, %s6, %s4
  loop: start=0, step=1, limit=4
  $region2: #{tpu_custom_call.1} parent=0 // loop_pre_header
    _
  $region3: #{tpu_custom_call.1} parent=0 // loop_header
    %s9 = sphi 0, %s13
    %p10 = scmp.ge.s32.totalorder %s9, 4
    %s16 = sphi 0, %s28
    %s17 = sphi 0, %s24
    %s18 = sphi 0, %s16
    %s19 = sphi 0, %s17
    %s20 = sphi 0, %s18
    %s21 = sphi 0, %s19
    %s33 = sphi 0, %s35
    %s36 = sphi 0, %s33
    %s37 = sphi 0, %s36
    %s53 = sphi 0, %s37
    %s57 = sphi 0, %s57
    %s59 = sphi 0, %s57
    %s60 = sphi 0, %s59
    %s74 = sphi 0, %s60
    %s78 = sphi 0, %s78
    %s80 = sphi 0, %s78
    %s81 = sphi 0, %s80
    %s95 = sphi 0, %s81
    %s101 = sphi 0, %s103
    %s104 = sphi 0, %s101
    %s105 = sphi 0, %s104
    %s121 = sphi 0, %s105
  $region4: #{tpu_custom_call.1} parent=0 // loop_header_branch
    %12 = sbr.rel (%p10) target = $region8
  $region5: #{tpu_custom_call.1} parent=0 // loop_body
    %s14 = ssub.s32 %s9, 1
    %s15 = ssub.s32 %s9, 2
    %s22 = sadd.s32 1, %s17
    %p23 = scmp.ge.s32.totalorder %s22, 1
    %s24 = scalar_select %p23, 0, %s22
    %s25 = sadd.s32 1, %s16
    %s26 = scalar_select %p23, %s25, %s16
    %p27 = scmp.ge.s32.totalorder %s26, 2
    %s28 = scalar_select %p27, 0, %s26
    %s29 = ssub.s32 %s16, %s28
    %s30 = ssub.s32 %s17, %s24
    %s31 = sor.u32 %s29, %s30
    %p32 = scmp.eq.s32.totalorder %s31, 0
    %s34 = sadd.s32 %s33, 1
    %s35 = scalar_select %p32, %s33, %s34
    %p38 = pneg %p32
    %p39 = scmp.eq.s32.totalorder %s9, 1
    %p40 = por %p38, %p39
    %p41 = scmp.ne.s32.totalorder %s33, %s36
    %p42 = scmp.eq.s32.totalorder %s9, 0
    %p43 = por %p41, %p42
    %p44 = scmp.ne.s32.totalorder %s33, %s36
    %p45 = scmp.eq.s32.totalorder %s14, 1
    %p46 = por %p44, %p45
    %p47 = scmp.ne.s32.totalorder %s36, %s37
    %p48 = scmp.eq.s32.totalorder %s14, 0
    %p49 = por %p47, %p48
    %p50 = scmp.ne.s32.totalorder %s36, %s37
    %p51 = scmp.eq.s32.totalorder %s15, 1
    %p52 = por %p50, %p51
    %p54 = scmp.ne.s32.totalorder %s37, %s53
    %p55 = scmp.eq.s32.totalorder %s15, 0
    %p56 = por %p54, %p55
    %s58 = sadd.s32 %s57, 1
    %p61 = scmp.eq.s32.totalorder %s9, 1
    %p62 = scmp.ne.s32.totalorder %s57, %s59
    %p63 = scmp.eq.s32.totalorder %s9, 0
    %p64 = por %p62, %p63
    %p65 = scmp.ne.s32.totalorder %s57, %s59
    %p66 = scmp.eq.s32.totalorder %s14, 1
    %p67 = por %p65, %p66
    %p68 = scmp.ne.s32.totalorder %s59, %s60
    %p69 = scmp.eq.s32.totalorder %s14, 0
    %p70 = por %p68, %p69
    %p71 = scmp.ne.s32.totalorder %s59, %s60
    %p72 = scmp.eq.s32.totalorder %s15, 1
    %p73 = por %p71, %p72
    %p75 = scmp.ne.s32.totalorder %s60, %s74
    %p76 = scmp.eq.s32.totalorder %s15, 0
    %p77 = por %p75, %p76
    %s79 = sadd.s32 %s78, 1
    %p82 = scmp.eq.s32.totalorder %s9, 1
    %p83 = scmp.ne.s32.totalorder %s78, %s80
    %p84 = scmp.eq.s32.totalorder %s9, 0
    %p85 = por %p83, %p84
    %p86 = scmp.ne.s32.totalorder %s78, %s80
    %p87 = scmp.eq.s32.totalorder %s14, 1
    %p88 = por %p86, %p87
    %p89 = scmp.ne.s32.totalorder %s80, %s81
    %p90 = scmp.eq.s32.totalorder %s14, 0
    %p91 = por %p89, %p90
    %p92 = scmp.ne.s32.totalorder %s80, %s81
    %p93 = scmp.eq.s32.totalorder %s15, 1
    %p94 = por %p92, %p93
    %p96 = scmp.ne.s32.totalorder %s81, %s95
    %p97 = scmp.eq.s32.totalorder %s15, 0
    %p98 = por %p96, %p97
    %s99 = ssub.s32 %s16, %s28
    %p100 = scmp.eq.s32.totalorder %s99, 0
    %s102 = sadd.s32 %s101, 1
    %s103 = scalar_select %p100, %s101, %s102
    %p106 = pneg %p100
    %p107 = scmp.eq.s32.totalorder %s9, 1
    %p108 = por %p106, %p107
    %p109 = scmp.ne.s32.totalorder %s101, %s104
    %p110 = scmp.eq.s32.totalorder %s9, 0
    %p111 = por %p109, %p110
    %p112 = scmp.ne.s32.totalorder %s101, %s104
    %p113 = scmp.eq.s32.totalorder %s14, 1
    %p114 = por %p112, %p113
    %p115 = scmp.ne.s32.totalorder %s104, %s105
    %p116 = scmp.eq.s32.totalorder %s14, 0
    %p117 = por %p115, %p116
    %p118 = scmp.ne.s32.totalorder %s104, %s105
    %p119 = scmp.eq.s32.totalorder %s15, 1
    %p120 = por %p118, %p119
    %p122 = scmp.ne.s32.totalorder %s105, %s121
    %p123 = scmp.eq.s32.totalorder %s15, 0
    %p124 = por %p122, %p123
    %p125 = scmp.le.s32.totalorder 1, %s9
    %p126 = scmp.lt.s32.totalorder %s9, 3
    %p127 = pnand %p125, %p126
    %p128 = pneg %p127
    // Predicated region
    $region9: #{tpu_custom_call.1} parent=5 // pred_check
      _
    $region10: #{tpu_custom_call.1} parent=5 // pred_check_branch
      %130 = sbr.rel (%p127) target = $region12
    $region11: #{tpu_custom_call.1} parent=5 // pred_region
      %s131 = ssub.s32 %s9, 1
      // Predicated region
      $region13: #{tpu_custom_call.1} parent=11 // pred_check
        %p132 = pneg %p70
      $region14: #{tpu_custom_call.1} parent=11 // pred_check_branch
        %134 = sbr.rel (%p132) target = $region16
      $region15: #{tpu_custom_call.1} parent=11 // pred_region
        _
      $region16: #{tpu_custom_call.1} parent=11 // pred_fallthru
        _
      // Predicated region
      $region17: #{tpu_custom_call.1} parent=11 // pred_check
        %p135 = pneg %p91
      $region18: #{tpu_custom_call.1} parent=11 // pred_check_branch
        %137 = sbr.rel (%p135) target = $region20
      $region19: #{tpu_custom_call.1} parent=11 // pred_region
        _
      $region20: #{tpu_custom_call.1} parent=11 // pred_fallthru
        _
    $region12: #{tpu_custom_call.1} parent=5 // pred_fallthru
      _
    %p138 = scmp.lt.s32.totalorder %s9, 2
    // Predicated region
    $region21: #{tpu_custom_call.1} parent=5 // pred_check
      %p139 = pneg %p138
    $region22: #{tpu_custom_call.1} parent=5 // pred_check_branch
      %141 = sbr.rel (%p139) target = $region24
    $region23: #{tpu_custom_call.1} parent=5 // pred_region
      // Predicated region
      $region25: #{tpu_custom_call.1} parent=23 // pred_check
        %p142 = pneg %p43
      $region26: #{tpu_custom_call.1} parent=23 // pred_check_branch
        %144 = sbr.rel (%p142) target = $region28
      $region27: #{tpu_custom_call.1} parent=23 // pred_region
        %s145 = smul.u32 2, %s17
        %p146 = scmp.lt.s32.totalorder %s16, 1
        %s147 = scalar_select %p146, %s16, 1
        %p148 = scmp.lt.s32.totalorder %s145, 1
        %s149 = scalar_select %p148, %s145, 1
        %s150 = smul.addr %s147, 2
        %s151 = sadd.s32 %s149, %s150
        %s152 = smul.addr %s151, 4
        %s153 = scalar_lea.vmem %s0, %s152
        %s154 = smul.u32 2, %s17
      $region28: #{tpu_custom_call.1} parent=23 // pred_fallthru
        _
    $region24: #{tpu_custom_call.1} parent=5 // pred_fallthru
      _
    %p155 = scmp.le.s32.totalorder 1, %s9
    %p156 = scmp.lt.s32.totalorder %s9, 3
    %p157 = pnand %p155, %p156
    %p158 = pneg %p157
    // Predicated region
    $region29: #{tpu_custom_call.1} parent=5 // pred_check
      _
    $region30: #{tpu_custom_call.1} parent=5 // pred_check_branch
      %160 = sbr.rel (%p157) target = $region32
    $region31: #{tpu_custom_call.1} parent=5 // pred_region
      %s161 = ssub.s32 %s9, 1
      %s162 = smul.u32 2, %s19
      %p163 = scmp.lt.s32.totalorder %s18, 1
      %s164 = scalar_select %p163, %s18, 1
      %p165 = scmp.lt.s32.totalorder %s162, 1
      %s166 = scalar_select %p165, %s162, 1
      %s167 = smul.addr %s164, 2
      %s168 = sadd.s32 %s166, %s167
      %s169 = smul.addr %s168, 4
      %s170 = scalar_lea.vmem %s0, %s169
      %p171 = pneg %p49
      %p172 = pneg %p46
      %p173 = pneg %p70
      %p174 = pneg %p67
      %p175 = pneg %p91
      %p176 = pneg %p88
      %p177 = pneg %p117
      %p178 = pneg %p114
      %p179 = scmp.lt.s32.totalorder %s18, 1
      %s180 = scalar_select %p179, %s18, 1
      %s181 = smul.addr %s180, 4
      %s182 = smul.addr %s181, 8
      %s183 = scalar_lea.vmem %s3, %s182
      %s184 = smul.u32 2, %s19
      %p185 = scmp.lt.s32.totalorder %s18, 1
      %s186 = scalar_select %p185, %s18, 1
      %p187 = scmp.lt.s32.totalorder %s184, 1
      %s188 = scalar_select %p187, %s184, 1
      %s189 = smul.addr %s186, 2
      %s190 = sadd.s32 %s188, %s189
      %s191 = smul.addr %s190, 4
      %s192 = scalar_lea.vmem %s0, %s191
      %s193 = smul.u32 2, %s19
      %p194 = scmp.lt.s32.totalorder %s18, 1
      %s195 = scalar_select %p194, %s18, 1
      %s196 = smul.addr %s195, 4
      %s197 = smul.addr %s196, 8
      %s198 = scalar_lea.vmem %s3, %s197
      %p199 = scmp.eq.s32.totalorder %s19, 0
      // Predicated region
      $region33: #{tpu_custom_call.1} parent=31 // pred_check
        %p200 = pneg %p199
      $region34: #{tpu_custom_call.1} parent=31 // pred_check_branch
        %202 = sbr.rel (%p200) target = $region36
      $region35: #{tpu_custom_call.1} parent=31 // pred_region
        %vm203 = vcmask 7168
        %204 = vst.msk [vmem:[#allocation2] sm:$0xff] %vm203, 0.0
        %205 = vst.msk [vmem:[#allocation2 + $0x8] sm:$0xff] %vm203, 0.0
        %206 = vst.msk [vmem:[#allocation2 + $0x10] sm:$0xff] %vm203, 0.0
        %207 = vst.msk [vmem:[#allocation2 + $0x18] sm:$0xff] %vm203, 0.0
      $region36: #{tpu_custom_call.1} parent=31 // pred_fallthru
        _
      %v208 = vld [vmem:[%s1] sm:$0xff]
      %v209 = vld [vmem:[%s1 + $0x8] sm:$0xff]
      %v210 = vld [vmem:[%s1 + $0x10] sm:$0xff]
      %v211 = vld [vmem:[%s1 + $0x18] sm:$0xff]
      %v212 = vld [vmem:[%s192] sm:$0xff]
      %v213 = vld [vmem:[%s2] sm:$0xff]
      %v214 = vld [vmem:[%s2 + $0x8] sm:$0xff]
      %v215 = vld [vmem:[%s2 + $0x10] sm:$0xff]
      %v216 = vld [vmem:[%s2 + $0x18] sm:$0xff]
      %218 = vset.pattern.permute.xlu0 0
      %219 = vperm.xlu0 %218, %v213
      %v220 = vpop.permute.xlu0 %219
      %223 = vset.pattern.permute.xlu0 0
      %224 = vperm.xlu0 %223, %v214
      %v225 = vpop.permute.xlu0 %224
      %228 = vset.pattern.permute.xlu0 0
      %229 = vperm.xlu0 %228, %v215
      %v230 = vpop.permute.xlu0 %229
      %233 = vset.pattern.permute.xlu0 0
      %234 = vperm.xlu0 %233, %v216
      %v235 = vpop.permute.xlu0 %234
      %v238 = vcombine.high %v212, %v212
      %vm239 = vcmask 31744
      %v241 = vsel %vm239, %v208, 0
      %v244 = vsel %vm239, %v209, 0
      %v247 = vsel %vm239, %v210, 0
      %v250 = vsel %vm239, %v211, 0
      %vm252 = vcmask 1043456
      %v253 = vsel %vm252, %v212, 0
      %v255 = vsel %vm252, %v238, 0
      %257 = vmatprep.subr.mxu0 %v255
      %258 = vmatpush1.msra.mxu0 %v253
      %259 = vmatprep.subr.mxu0 0.0
      %260 = vmatpush1.msra.mxu0 0.0
      %261 = vmatprep.subr.mxu0 0.0
      %262 = vmatpush1.msra.mxu0 0.0
      %263 = vmatprep.subr.mxu0 0.0
      %264 = vmatpush1.msra.mxu0 0.0
      %265 = vmatprep.subr.mxu0 0.0
      %266 = vmatpush1.msra.mxu0 0.0
      %267 = vmatprep.subr.mxu0 0.0
      %268 = vmatpush1.msra.mxu0 0.0
      %269 = vmatprep.subr.mxu0 0.0
      %270 = vmatpush1.msra.mxu0 0.0
      %271 = vmatprep.subr.mxu0 0.0
      %272 = vmatpush1.msra.mxu0 0.0
      %273 = vmatprep.subr.mxu0 0.0
      %274 = vmatpush1.msra.mxu0 0.0
      %275 = vmatprep.subr.mxu0 0.0
      %276 = vmatpush1.msra.mxu0 0.0
      %277 = vmatprep.subr.mxu0 0.0
      %278 = vmatpush1.msra.mxu0 0.0
      %279 = vmatprep.subr.mxu0 0.0
      %280 = vmatpush1.msra.mxu0 0.0
      %281 = vmatprep.subr.mxu0 0.0
      %282 = vmatpush1.msra.mxu0 0.0
      %283 = vmatprep.subr.mxu0 0.0
      %284 = vmatpush1.msra.mxu0 0.0
      %285 = vmatprep.subr.mxu0 0.0
      %286 = vmatpush1.msra.mxu0 0.0
      %287 = vmatprep.subr.mxu0 0.0
      %288 = vmatpush1.msra.mxu0 0.0
      %289 = vmatprep.subr.mxu0 0.0
      %290 = vmatpush1.msra.mxu0 0.0
      %291 = vmatprep.subr.mxu0 0.0
      %292 = vmatpush1.msra.mxu0 0.0
      %293 = vmatprep.subr.mxu0 0.0
      %294 = vmatpush1.msra.mxu0 0.0
      %295 = vmatprep.subr.mxu0 0.0
      %296 = vmatpush1.msra.mxu0 0.0
      %297 = vmatprep.subr.mxu0 0.0
      %298 = vmatpush1.msra.mxu0 0.0
      %299 = vmatprep.subr.mxu0 0.0
      %300 = vmatpush1.msra.mxu0 0.0
      %301 = vmatprep.subr.mxu0 0.0
      %302 = vmatpush1.msra.mxu0 0.0
      %303 = vmatprep.subr.mxu0 0.0
      %304 = vmatpush1.msra.mxu0 0.0
      %305 = vmatprep.subr.mxu0 0.0
      %306 = vmatpush1.msra.mxu0 0.0
      %307 = vmatprep.subr.mxu0 0.0
      %308 = vmatpush1.msra.mxu0 0.0
      %309 = vmatprep.subr.mxu0 0.0
      %310 = vmatpush1.msra.mxu0 0.0
      %311 = vmatprep.subr.mxu0 0.0
      %312 = vmatpush1.msra.mxu0 0.0
      %313 = vmatprep.subr.mxu0 0.0
      %314 = vmatpush1.msra.mxu0 0.0
      %315 = vmatprep.subr.mxu0 0.0
      %316 = vmatpush1.msra.mxu0 0.0
      %317 = vmatprep.subr.mxu0 0.0
      %318 = vmatpush1.msra.mxu0 0.0
      %319 = vmatprep.subr.mxu0 0.0
      %320 = vmatpush1.msra.mxu0 0.0
      %321 = vmatprep.mubr.f32.mxu0 0.0
      %322 = vmatmul.mubr.f32.gmra.mrb[0].mxu0 %v241
      %v323 = vpop.f32.mrb[0].mxu0
      %v324 = vadd.f32 %v220, %v323
      %v325 = vpop.f32.mrb[0].mxu0
      %v326 = vadd.f32 %v220, %v325
      %327 = vmatprep.mubr.f32.mxu0 0.0
      %328 = vmatmul.mubr.f32.gmra.mrb[0].mxu0 %v244
      %v329 = vpop.f32.mrb[0].mxu0
      %v330 = vadd.f32 %v225, %v329
      %v331 = vpop.f32.mrb[0].mxu0
      %v332 = vadd.f32 %v225, %v331
      %333 = vmatprep.mubr.f32.mxu0 0.0
      %334 = vmatmul.mubr.f32.gmra.mrb[0].mxu0 %v247
      %v335 = vpop.f32.mrb[0].mxu0
      %v336 = vadd.f32 %v230, %v335
      %v337 = vpop.f32.mrb[0].mxu0
      %v338 = vadd.f32 %v230, %v337
      %339 = vmatprep.mubr.f32.mxu0 0.0
      %340 = vmatmul.mubr.f32.gmra.mrb[0].mxu0 %v250
      %v341 = vpop.f32.mrb[0].mxu0
      %v342 = vadd.f32 %v235, %v341
      %v343 = vpop.f32.mrb[0].mxu0
      %v344 = vadd.f32 %v235, %v343
      %345 = vdwg.mxu0
      %v346 = vmax.f32 %v324, 0.0
      %v347 = vmax.f32 %v326, 0.0
      %v348 = vmax.f32 %v330, 0.0
      %v349 = vmax.f32 %v332, 0.0
      %v350 = vmax.f32 %v336, 0.0
      %v351 = vmax.f32 %v338, 0.0
      %v352 = vmax.f32 %v342, 0.0
      %v353 = vmax.f32 %v344, 0.0
      %v354 = vld [vmem:[#allocation2] sm:$0xff]
      %v355 = vld [vmem:[#allocation2 + $0x8] sm:$0xff]
      %v356 = vld [vmem:[#allocation2 + $0x10] sm:$0xff]
      %v357 = vld [vmem:[#allocation2 + $0x18] sm:$0xff]
      %v358 = vadd.f32 %v346, %v347
      %359 = vadd.xlane.f32.xlu0 %v358
      %v360 = vpop.xlane.xlu0 %359
      %v361 = vadd.f32 %v348, %v349
      %362 = vadd.xlane.f32.xlu0 %v361
      %v363 = vpop.xlane.xlu0 %362
      %v364 = vadd.f32 %v350, %v351
      %365 = vadd.xlane.f32.xlu0 %v364
      %v366 = vpop.xlane.xlu0 %365
      %v367 = vadd.f32 %v352, %v353
      %368 = vadd.xlane.f32.xlu0 %v367
      %v369 = vpop.xlane.xlu0 %368
      %v370 = vadd.f32 %v354, %v360
      %v371 = vadd.f32 %v355, %v363
      %v372 = vadd.f32 %v356, %v366
      %v373 = vadd.f32 %v357, %v369
      %vm374 = vcmask 7168
      %375 = vst.msk [vmem:[#allocation2] sm:$0xff] %vm374, %v370
      %376 = vst.msk [vmem:[#allocation2 + $0x8] sm:$0xff] %vm374, %v371
      %377 = vst.msk [vmem:[#allocation2 + $0x10] sm:$0xff] %vm374, %v372
      %378 = vst.msk [vmem:[#allocation2 + $0x18] sm:$0xff] %vm374, %v373
      // Predicated region
      $region37: #{tpu_custom_call.1} parent=31 // pred_check
        %p379 = pneg %p199
      $region38: #{tpu_custom_call.1} parent=31 // pred_check_branch
        %381 = sbr.rel (%p379) target = $region40
      $region39: #{tpu_custom_call.1} parent=31 // pred_region
        %v382 = vld [vmem:[#allocation2] sm:$0xff]
        %v383 = vld [vmem:[#allocation2 + $0x8] sm:$0xff]
        %v384 = vld [vmem:[#allocation2 + $0x10] sm:$0xff]
        %v385 = vld [vmem:[#allocation2 + $0x18] sm:$0xff]
        %v386 = vmul.f32 %v382, 0.00390625
        %v387 = vmul.f32 %v383, 0.00390625
        %v388 = vmul.f32 %v384, 0.00390625
        %v389 = vmul.f32 %v385, 0.00390625
        %390 = vst.msk [vmem:[%s198] sm:$0xff] %vm374, %v386
        %391 = vst.msk [vmem:[%s198 + $0x8] sm:$0xff] %vm374, %v387
        %392 = vst.msk [vmem:[%s198 + $0x10] sm:$0xff] %vm374, %v388
        %393 = vst.msk [vmem:[%s198 + $0x18] sm:$0xff] %vm374, %v389
      $region40: #{tpu_custom_call.1} parent=31 // pred_fallthru
        _
      %p394 = scmp.lt.s32.totalorder %s18, 1
      %s395 = scalar_select %p394, %s18, 1
      %s396 = smul.addr %s395, 4
      %s397 = smul.addr %s396, 8
      %s398 = scalar_lea.vmem %s3, %s397
      // Predicated region
      $region41: #{tpu_custom_call.1} parent=31 // pred_check
        %p399 = pneg %p114
      $region42: #{tpu_custom_call.1} parent=31 // pred_check_branch
        %401 = sbr.rel (%p399) target = $region44
      $region43: #{tpu_custom_call.1} parent=31 // pred_region
        _
      $region44: #{tpu_custom_call.1} parent=31 // pred_fallthru
        _
    $region32: #{tpu_custom_call.1} parent=5 // pred_fallthru
      _
    %p402 = scmp.le.s32.totalorder 2, %s9
    // Predicated region
    $region45: #{tpu_custom_call.1} parent=5 // pred_check
      %p403 = pneg %p402
    $region46: #{tpu_custom_call.1} parent=5 // pred_check_branch
      %405 = sbr.rel (%p403) target = $region48
    $region47: #{tpu_custom_call.1} parent=5 // pred_region
      %s406 = ssub.s32 %s9, 2
      // Predicated region
      $region49: #{tpu_custom_call.1} parent=47 // pred_check
        %p407 = pneg %p120
      $region50: #{tpu_custom_call.1} parent=47 // pred_check_branch
        %409 = sbr.rel (%p407) target = $region52
      $region51: #{tpu_custom_call.1} parent=47 // pred_region
        %p410 = scmp.lt.s32.totalorder %s20, 1
        %s411 = scalar_select %p410, %s20, 1
        %s412 = smul.addr %s411, 4
        %s413 = smul.addr %s412, 8
        %s414 = scalar_lea.vmem %s3, %s413
      $region52: #{tpu_custom_call.1} parent=47 // pred_fallthru
        _
    $region48: #{tpu_custom_call.1} parent=5 // pred_fallthru
      _
  $region6: #{tpu_custom_call.1} parent=0 // loop_footer
    %s13 = sadd.s32 1, %s9
  $region7: #{tpu_custom_call.1} parent=0 // loop_footer_branch
    %8 = sbr.rel target = $region3
  $region8: #{tpu_custom_call.1} parent=0 // loop_exit
    _

</llo_original>
